<compile_context>
chip_gen: v7x
topology: tpu7x:2x2x1
jax: 0.10.0
libtpu: 0.0.40
codegen_flags: <defaults>
</compile_context>

<pallas_src>
import jax
import jax.numpy as jnp
from jax.experimental import pallas as pl
from jax.experimental.pallas import tpu as pltpu


def _multiplication_kernel(x_ref, x1_ref, x2_ref, p_ref, o_ref):
    # p_ref: (3, N) f32 parameter rows, already pre-scaled by 1/denominator in
    # the wrapper. Each (1, N) row broadcasts over the sublane (row) axis.
    p0 = p_ref[0:1, :]
    p1 = p_ref[1:2, :]
    p2 = p_ref[2:3, :]
    acc = x_ref[...] * p0 + x1_ref[...] * p1 + x2_ref[...] * p2
    o_ref[...] = acc.astype(o_ref.dtype)


def _round_up(v, m):
    return ((v + m - 1) // m) * m


def _pick_tile(m, n, itemsize, max_tile_m=None):
    """Rows per grid step, from a VMEM byte budget (4 streams x 2 buffers)."""
    gran = {4: 8, 2: 16, 1: 32}.get(itemsize, 8)  # sublane packing granularity
    try:
        phys_vmem = pltpu.get_tpu_info().vmem_capacity_bytes
    except Exception:
        phys_vmem = 64 << 20  # conservative (v7x per-TC physical VMEM)
    # Budget for the 4 big double-buffered streams; leave >= half of VMEM free
    # and cap at 32 MiB (plenty to amortize the ~0.35 us per-step overhead).
    budget = min(phys_vmem // 2, 32 << 20)
    per_row = n * itemsize * 4 * 2  # 4 streams x 2 buffers
    tile = max(gran, (budget // per_row) // gran * gran)
    tile = min(tile, _round_up(m, gran))      # never bigger than needed
    if max_tile_m is not None:
        tile = min(tile, _round_up(int(max_tile_m), gran))
    return max(gran, tile), gran


def multiplication_forward(x, x1, x2, p0, p1, p2, *, max_tile_m=None,
                           alias_x=False):
    """x, x1, x2: (..., type_n); p0, p1, p2: (type_n,)."""
    orig_shape = x.shape
    n = orig_shape[-1]
    xf = x.reshape(-1, n)
    x1f = x1.reshape(-1, n)
    x2f = x2.reshape(-1, n)
    m = xf.shape[0]
    itemsize = jnp.dtype(x.dtype).itemsize

    # Fold the scalar denominator into the tiny (3, N) parameter block (f32):
    # removes every reduce/divide from the hot Pallas loop. Kernel math stays
    # in f32 even for bf16 inputs (better rounding than pre-scaled bf16).
    p0f = p0.astype(jnp.float32)
    p1f = p1.astype(jnp.float32)
    p2f = p2.astype(jnp.float32)
    inv_denom = 1.0 / (jnp.mean(p0f) + jnp.mean(p1f) + jnp.mean(p2f))
    params = jnp.stack([p0f, p1f, p2f], axis=0) * inv_denom  # (3, N) f32

    tile, _gran = _pick_tile(m, n, itemsize, max_tile_m)
    grid_m = pl.cdiv(m, tile)  # partial last block handled by Pallas (no pad)

    row_spec = pl.BlockSpec((tile, n), lambda i: (i, 0))
    par_spec = pl.BlockSpec((3, n), lambda i: (0, 0))

    # Raise the scoped VMEM limit to cover the chosen footprint (defaults are
    # 16/32/32 MiB on v5e/v6e/v7x); never exceeds ~34 MiB given the budget cap.
    needed = tile * n * itemsize * 8 + 2 * 3 * n * 4 + (1 << 20)
    vmem_limit = int(min(max(needed, 32 << 20), 48 << 20))

    cost = pl.CostEstimate(
        flops=5 * m * n,
        transcendentals=0,
        bytes_accessed=4 * m * n * itemsize + 3 * n * 4,
    )

    kwargs = {}
    if alias_x:
        # Only valid if the caller does not need x after the call.
        kwargs["input_output_aliases"] = {0: 0}

    out = pl.pallas_call(
        _multiplication_kernel,
        out_shape=jax.ShapeDtypeStruct((m, n), x.dtype),
        grid_spec=pltpu.PrefetchScalarGridSpec(
            num_scalar_prefetch=0,
            grid=(grid_m,),
            in_specs=[row_spec, row_spec, row_spec, par_spec],
            out_specs=row_spec,
        ),
        compiler_params=pltpu.CompilerParams(
            dimension_semantics=("parallel",),
            vmem_limit_bytes=vmem_limit,
        ),
        cost_estimate=cost,
        **kwargs,
    )(xf, x1f, x2f, params)

    return out.reshape(orig_shape)


def _reference(x, x1, x2, p0, p1, p2):
    denom = jnp.mean(p0 + jnp.mean(p1) + jnp.mean(p2))
    return (x * p0 + x1 * p1 + x2 * p2) / denom


if __name__ == "__main__":
    key = jax.random.PRNGKey(0)
    k_x, k_x1, k_x2, k_p1, k_p2 = jax.random.split(key, 5)

    type_n = 128  # lands on the 128-lane axis

    # Deterministic parameter init mirroring nn.Parameter(torch.ones/torch.rand)
    p0 = jnp.ones((type_n,), dtype=jnp.float32)
    p1 = jax.random.uniform(k_p1, (type_n,), dtype=jnp.float32)
    p2 = jax.random.uniform(k_p2, (type_n,), dtype=jnp.float32)

    # Test 1: evenly divisible rows (batch=2, seq=8 -> m=16).
    batch, seq = 2, 8
    x = jax.random.normal(k_x, (batch, seq, type_n), dtype=jnp.float32)
    x1 = jax.random.normal(k_x1, (batch, seq, type_n), dtype=jnp.float32)
    x2 = jax.random.normal(k_x2, (batch, seq, type_n), dtype=jnp.float32)

    out = jax.block_until_ready(multiplication_forward(x, x1, x2, p0, p1, p2))
    ref = _reference(x, x1, x2, p0, p1, p2)
    assert jnp.allclose(out, ref, atol=1e-5, rtol=1e-5), "mismatch (even shape)"

    # Test 2: non-divisible rows (m=18) with a small forced tile (8) so the
    # grid has a clipped partial last block — exercises the no-pad path.
    batch2, seq2 = 2, 9
    xb = jax.random.normal(k_x, (batch2, seq2, type_n), dtype=jnp.float32)
    x1b = jax.random.normal(k_x1, (batch2, seq2, type_n), dtype=jnp.float32)
    x2b = jax.random.normal(k_x2, (batch2, seq2, type_n), dtype=jnp.float32)

    out2 = jax.block_until_ready(
        multiplication_forward(xb, x1b, x2b, p0, p1, p2, max_tile_m=8))
    ref2 = _reference(xb, x1b, x2b, p0, p1, p2)
    assert jnp.allclose(out2, ref2, atol=1e-5, rtol=1e-5), "mismatch (partial)"

    print("KERNEL_OK")
</pallas_src>

<mosaic_0001>
module attributes {stable_mosaic.version = 11 : i64} {
  func.func @_multiplication_kernel(%arg0: i32, %arg1: memref<16x128xf32, #tpu.memory_space<vmem>>, %arg2: memref<16x128xf32, #tpu.memory_space<vmem>>, %arg3: memref<16x128xf32, #tpu.memory_space<vmem>>, %arg4: memref<3x128xf32, #tpu.memory_space<vmem>>, %arg5: memref<16x128xf32, #tpu.memory_space<vmem>>) attributes {dimension_semantics = [#tpu.dimension_semantics<parallel>], iteration_bounds = array<i64: 1>, scalar_prefetch = 0 : i64, scratch_operands = 0 : i64, tpu.core_type = #tpu.core_type<tc>, window_params = [{transform_indices = @transform_0, window_bounds = array<i64: 16, 128>}, {transform_indices = @transform_1, window_bounds = array<i64: 16, 128>}, {transform_indices = @transform_2, window_bounds = array<i64: 16, 128>}, {pipeline_mode = #tpu.pipeline_mode<synchronous>, transform_indices = @transform_3, window_bounds = array<i64: 3, 128>}, {transform_indices = @transform_4, window_bounds = array<i64: 16, 128>}]} {
    %c0 = arith.constant 0 : index
    %c0_0 = arith.constant 0 : index
    %0 = vector.load %arg4[%c0, %c0_0] : memref<3x128xf32, #tpu.memory_space<vmem>>, vector<1x128xf32>
    %c1 = arith.constant 1 : index
    %c0_1 = arith.constant 0 : index
    %1 = vector.load %arg4[%c1, %c0_1] : memref<3x128xf32, #tpu.memory_space<vmem>>, vector<1x128xf32>
    %c2 = arith.constant 2 : index
    %c0_2 = arith.constant 0 : index
    %2 = vector.load %arg4[%c2, %c0_2] : memref<3x128xf32, #tpu.memory_space<vmem>>, vector<1x128xf32>
    %c0_3 = arith.constant 0 : index
    %c0_4 = arith.constant 0 : index
    %3 = vector.load %arg1[%c0_3, %c0_4] : memref<16x128xf32, #tpu.memory_space<vmem>>, vector<16x128xf32>
    %4 = vector.broadcast %0 : vector<1x128xf32> to vector<16x128xf32>
    %5 = arith.mulf %3, %4 : vector<16x128xf32>
    %c0_5 = arith.constant 0 : index
    %c0_6 = arith.constant 0 : index
    %6 = vector.load %arg2[%c0_5, %c0_6] : memref<16x128xf32, #tpu.memory_space<vmem>>, vector<16x128xf32>
    %7 = vector.broadcast %1 : vector<1x128xf32> to vector<16x128xf32>
    %8 = arith.mulf %6, %7 : vector<16x128xf32>
    %9 = arith.addf %5, %8 : vector<16x128xf32>
    %c0_7 = arith.constant 0 : index
    %c0_8 = arith.constant 0 : index
    %10 = vector.load %arg3[%c0_7, %c0_8] : memref<16x128xf32, #tpu.memory_space<vmem>>, vector<16x128xf32>
    %11 = vector.broadcast %2 : vector<1x128xf32> to vector<16x128xf32>
    %12 = arith.mulf %10, %11 : vector<16x128xf32>
    %13 = arith.addf %9, %12 : vector<16x128xf32>
    %c0_9 = arith.constant 0 : index
    %c0_10 = arith.constant 0 : index
    %14 = vector.load %arg5[%c0_9, %c0_10] : memref<16x128xf32, #tpu.memory_space<vmem>>, vector<16x128xf32>
    tpu.vector_store %arg5[%c0_9, %c0_10], %13 {strides = array<i32>} : memref<16x128xf32, #tpu.memory_space<vmem>>, vector<16x128xf32>,
    return
  }
  func.func @transform_0(%arg0: i32) -> (i32, i32) {
    %c0_i32 = arith.constant 0 : i32
    %c0_i32_0 = arith.constant 0 : i32
    return %arg0, %c0_i32 : i32, i32
  }
  func.func @transform_1(%arg0: i32) -> (i32, i32) {
    %c0_i32 = arith.constant 0 : i32
    %c0_i32_0 = arith.constant 0 : i32
    return %arg0, %c0_i32 : i32, i32
  }
  func.func @transform_2(%arg0: i32) -> (i32, i32) {
    %c0_i32 = arith.constant 0 : i32
    %c0_i32_0 = arith.constant 0 : i32
    return %arg0, %c0_i32 : i32, i32
  }
  func.func @transform_3(%arg0: i32) -> (i32, i32) {
    %c0_i32 = arith.constant 0 : i32
    %c0_i32_0 = arith.constant 0 : i32
    %c0_i32_1 = arith.constant 0 : i32
    return %c0_i32, %c0_i32_0 : i32, i32
  }
  func.func @transform_4(%arg0: i32) -> (i32, i32) {
    %c0_i32 = arith.constant 0 : i32
    %c0_i32_0 = arith.constant 0 : i32
    return %arg0, %c0_i32 : i32, i32
  }
}

</mosaic_0001>

<llo_original>
// kernel: tpu_custom_call.1
$region0: #{tpu_custom_call.1}
  #allocation0 [shape = 'u32[]', space=smem, size = 0x4, offset = 0x4, fixed_abs, tag = 'smem constant byte address 0x4 - core index']
  #allocation1 [shape = 'u32[144,128]{1,0:T(1,128)}', space=vmem, size = 0x12000, scoped, tag = 'internal scratch']
  %s0 = inlined_call_operand.hbm [shape: f32[16,128], index: 0, kind: input, shape index: {}]
  %s1 = inlined_call_operand.hbm [shape: f32[16,128], index: 1, kind: input, shape index: {}]
  %s2 = inlined_call_operand.hbm [shape: f32[16,128], index: 2, kind: input, shape index: {}]
  %s3 = inlined_call_operand.vmem [shape: f32[3,128], index: 3, kind: input, shape index: {}]
  %s4 = inlined_call_operand.hbm [shape: f32[16,128], index: 4, kind: output, shape index: {}]
  %s5 = sld [smem:[#allocation0]]
  $region38: #{tpu_custom_call.1} parent=0
    _
  %s7 = ssub.s32 1, %s5
  %s8 = scalar_select 0, %s7, %s5
  $region1: #{tpu_custom_call.1} parent=0
    #allocation2 [shape = 'u8[8192]{0}', space=vmem, size = 0x2000, scoped, tag = 'input window, operand 0, single buffered']
    #allocation3 [shape = 's32[1]{0}', space=sflag, size = 0x4, scoped, tag = 'scoped memory for tpu_custom_call.1']
    #allocation4 [shape = 's32[1]{0}', space=sflag, size = 0x4, scoped, tag = 'scoped memory for tpu_custom_call.1']
    #allocation5 [shape = 'u8[8192]{0}', space=vmem, size = 0x2000, scoped, tag = 'input window, operand 1, single buffered']
    #allocation6 [shape = 's32[1]{0}', space=sflag, size = 0x4, scoped, tag = 'scoped memory for tpu_custom_call.1']
    #allocation7 [shape = 'u8[8192]{0}', space=vmem, size = 0x2000, scoped, tag = 'input window, operand 2, single buffered']
    #allocation8 [shape = 'u8[8192]{0}', space=vmem, size = 0x2000, scoped, tag = 'output window, operand 0, single buffered']
    %9 = vsyncpa [#allocation3], 0
    %10 = vsyncpa [#allocation6], 0
    %11 = vsyncpa [#allocation4], 0
    // Predicated region
    $region2: #{tpu_custom_call.1} parent=1 // pred_check
      _
    $region3: #{tpu_custom_call.1} parent=1 // pred_check_branch
      %13 = sbr.rel (0) target = $region5
    $region4: #{tpu_custom_call.1} parent=1 // pred_region
      %s15 = ssub.s32 256, 256
      %16 = vsyncadd [#allocation3], %s15
      %s17 = sshll.u32 [#allocation2], 4
      %s18 = int_to_ptr.vmem [resolvable:$true] %s17
      %23 = dma.hbm_to_vmem [thread:$0]  %s0, 256, %s18, [#allocation3], 128, 128, 8
    $region5: #{tpu_custom_call.1} parent=1 // pred_fallthru
      _
    // Predicated region
    $region6: #{tpu_custom_call.1} parent=1 // pred_check
      _
    $region7: #{tpu_custom_call.1} parent=1 // pred_check_branch
      %25 = sbr.rel (0) target = $region9
    $region8: #{tpu_custom_call.1} parent=1 // pred_region
      %s27 = ssub.s32 256, 256
      %28 = vsyncadd [#allocation6], %s27
      %s29 = sshll.u32 [#allocation5], 4
      %s30 = int_to_ptr.vmem [resolvable:$true] %s29
      %35 = dma.hbm_to_vmem [thread:$0]  %s1, 256, %s30, [#allocation6], 128, 128, 8
    $region9: #{tpu_custom_call.1} parent=1 // pred_fallthru
      _
    // Predicated region
    $region10: #{tpu_custom_call.1} parent=1 // pred_check
      _
    $region11: #{tpu_custom_call.1} parent=1 // pred_check_branch
      %37 = sbr.rel (0) target = $region13
    $region12: #{tpu_custom_call.1} parent=1 // pred_region
      %s39 = ssub.s32 256, 256
      %40 = vsyncadd [#allocation6], %s39
      %s41 = sshll.u32 [#allocation7], 4
      %s42 = int_to_ptr.vmem [resolvable:$true] %s41
      %47 = dma.hbm_to_vmem [thread:$0]  %s2, 256, %s42, [#allocation6], 128, 128, 8
    $region13: #{tpu_custom_call.1} parent=1 // pred_fallthru
      _
    // Predicated region
    $region14: #{tpu_custom_call.1} parent=1 // pred_check
      _
    $region15: #{tpu_custom_call.1} parent=1 // pred_check_branch
      %49 = sbr.rel (0) target = $region17
    $region16: #{tpu_custom_call.1} parent=1 // pred_region
      _
    $region17: #{tpu_custom_call.1} parent=1 // pred_fallthru
      _
    // Predicated region
    $region18: #{tpu_custom_call.1} parent=1 // pred_check
      _
    $region19: #{tpu_custom_call.1} parent=1 // pred_check_branch
      %51 = sbr.rel (0) target = $region21
    $region20: #{tpu_custom_call.1} parent=1 // pred_region
      %52 = dma.done [#allocation3], 256
    $region21: #{tpu_custom_call.1} parent=1 // pred_fallthru
      _
    // Predicated region
    $region22: #{tpu_custom_call.1} parent=1 // pred_check
      _
    $region23: #{tpu_custom_call.1} parent=1 // pred_check_branch
      %54 = sbr.rel (0) target = $region25
    $region24: #{tpu_custom_call.1} parent=1 // pred_region
      %55 = dma.done [#allocation6], 256
    $region25: #{tpu_custom_call.1} parent=1 // pred_fallthru
      _
    // Predicated region
    $region26: #{tpu_custom_call.1} parent=1 // pred_check
      _
    $region27: #{tpu_custom_call.1} parent=1 // pred_check_branch
      %57 = sbr.rel (0) target = $region29
    $region28: #{tpu_custom_call.1} parent=1 // pred_region
      %58 = dma.done [#allocation6], 256
    $region29: #{tpu_custom_call.1} parent=1 // pred_fallthru
      _
    %v59 = vld [vmem:[%s3] sm:$0x1]
    %v60 = vld [vmem:[%s3 + $0x1] sm:$0x1]
    %v61 = vld [vmem:[%s3 + $0x2] sm:$0x1]
    %v62 = vld [vmem:[#allocation2] sm:$0xff]
    %v63 = vld [vmem:[#allocation2 + $0x8] sm:$0xff]
    %v64 = vlaneseq
    %v65 = vshrl.u32 %v64, 7
    %v66 = vsub.s32 0, %v65
    %v67 = vrot.slane %v59, %v66
    %v68 = vmul.f32 %v62, %v67
    %v69 = vmul.f32 %v63, %v67
    %v70 = vld [vmem:[#allocation5] sm:$0xff]
    %v71 = vld [vmem:[#allocation5 + $0x8] sm:$0xff]
    %v72 = vlaneseq
    %v73 = vshrl.u32 %v72, 7
    %v74 = vsub.s32 0, %v73
    %v75 = vrot.slane %v60, %v74
    %v76 = vmul.f32 %v70, %v75
    %v77 = vmul.f32 %v71, %v75
    %v78 = vadd.f32 %v68, %v76
    %v79 = vadd.f32 %v69, %v77
    %v80 = vld [vmem:[#allocation7] sm:$0xff]
    %v81 = vld [vmem:[#allocation7 + $0x8] sm:$0xff]
    %v82 = vlaneseq
    %v83 = vshrl.u32 %v82, 7
    %v84 = vsub.s32 0, %v83
    %v85 = vrot.slane %v61, %v84
    %v86 = vmul.f32 %v80, %v85
    %v87 = vmul.f32 %v81, %v85
    %v88 = vadd.f32 %v78, %v86
    %v89 = vadd.f32 %v79, %v87
    %90 = vst [vmem:[#allocation8] sm:$0xff] %v88
    %91 = vst [vmem:[#allocation8 + $0x8] sm:$0xff] %v89
    // Predicated region
    $region30: #{tpu_custom_call.1} parent=1 // pred_check
      _
    $region31: #{tpu_custom_call.1} parent=1 // pred_check_branch
      %93 = sbr.rel (0) target = $region33
    $region32: #{tpu_custom_call.1} parent=1 // pred_region
      %s95 = ssub.s32 256, 256
      %96 = vsyncadd [#allocation4], %s95
      %s97 = sshll.u32 [#allocation8], 4
      %s98 = int_to_ptr.vmem [resolvable:$true] %s97
      %103 = dma.vmem_to_hbm [thread:$0]  %s98, 256, %s4, [#allocation4], 128, 128, 8
    $region33: #{tpu_custom_call.1} parent=1 // pred_fallthru
      _
    // Predicated region
    $region34: #{tpu_custom_call.1} parent=1 // pred_check
      _
    $region35: #{tpu_custom_call.1} parent=1 // pred_check_branch
      %105 = sbr.rel (0) target = $region37
    $region36: #{tpu_custom_call.1} parent=1 // pred_region
      %106 = dma.done [#allocation4], 256
    $region37: #{tpu_custom_call.1} parent=1 // pred_fallthru
      _
    %107 = vsyncpa [#allocation3], 1
    %108 = vsyncpa [#allocation6], 1
    %109 = vsyncpa [#allocation4], 1

</llo_original>
